<compile_context>
chip_gen: v7x
topology: tpu7x:2x2x1
jax: 0.10.0
libtpu: 0.0.40
codegen_flags: <defaults>
</compile_context>

<pallas_src>
import functools

import jax
import jax.numpy as jnp
from jax.experimental import pallas as pl
from jax.experimental.pallas import tpu as pltpu


# --------------------------------------------------------------------------
# Sizing helpers
# --------------------------------------------------------------------------
def _vmem_limits(itemsize):
    """Per-generation VMEM budget (v7x: 64 MiB physical, v5e/v6e: 128 MiB)."""
    try:
        cap = int(pltpu.get_tpu_info().vmem_capacity_bytes)
    except Exception:  # be safe if the query is unavailable
        cap = 64 << 20                                  # v7x-sized fallback
    vmem_limit = int(min(cap // 2, 64 << 20))           # 32 MiB v7x, 64 MiB v5e/v6e
    # 2 in + 2 out double-buffered blocks plus ~2-3x block of in-kernel f32
    # upcast temps must fit with headroom inside the scoped limit.
    denom = 8 if itemsize >= 4 else 12
    return vmem_limit, max(1 << 15, vmem_limit // denom)


def _sublane_pack(itemsize):
    # f32 -> 8, bf16 -> 16, int8/fp8 -> 32 rows per sublane group.
    return max(8, 32 // itemsize)


def _choose_tile_rows(n_rows, row_bytes, sublane, max_block_bytes):
    """Largest sublane-aligned row tile under the VMEM byte cap, while keeping
    several grid steps alive (pipelining; both v7x TensorCores)."""
    if n_rows <= sublane:
        return int(n_rows)                              # single tiny full block
    by_vmem = max(sublane, max_block_bytes // max(1, row_bytes))
    tile = min(n_rows, by_vmem)
    if n_rows >= 2 * sublane:
        target_steps = min(4, n_rows // sublane)        # >= 2 steps, aim for 4
        tile = min(tile, -(-n_rows // target_steps))
    tile = max(sublane, (tile // sublane) * sublane)
    return int(tile)


# --------------------------------------------------------------------------
# Kernels: PyTorch-style LayerNorm  out = a_2*(x-mean)/(std+eps) + b_2
#   std = sqrt(sum((x-mean)^2)/(D-1))   (torch.std default: unbiased),
#   eps added to std (NOT variance).
# --------------------------------------------------------------------------
def _layernorm_kernel(x_ref, a_ref, b_ref, o_ref, *, eps):
    """Reduction over the lane (last) axis; use when D is lane-dense (>=128)."""
    x = x_ref[...].astype(jnp.float32)                  # (TM, D)
    d = x.shape[-1]
    mean = jnp.sum(x, axis=-1, keepdims=True) * jnp.float32(1.0 / d)
    diff = x - mean                                     # two-pass: no cancellation
    var = jnp.sum(diff * diff, axis=-1, keepdims=True) * jnp.float32(1.0 / (d - 1))
    inv = pl.reciprocal(jnp.sqrt(var) + jnp.float32(eps), approx=False)
    y = a_ref[...].astype(jnp.float32) * (diff * inv) + b_ref[...].astype(jnp.float32)
    o_ref[...] = y.astype(o_ref.dtype)


def _layernorm_grouped_kernel(x_ref, a_ref, b_ref, m_ref, o_ref, *, d, eps):
    """Lane-dense LayerNorm for small d: g = 128 // d rows packed per kernel row.

    Segment (per-original-row) sums over d-wide lane groups are computed on the
    idle MXU with a 0/1 block-diagonal matrix m (the same matmul also broadcasts
    the per-segment result back to every lane of its segment).  The hi/lo bf16
    split keeps the sums accurate to ~1e-5 even if the f32 matmul runs as a
    single bf16 pass.
    """
    x = x_ref[...].astype(jnp.float32)                  # (TM, P), P = g*d
    m = m_ref[...]                                      # (P, P) 0/1 f32

    def seg_sum(v):
        hi = v.astype(jnp.bfloat16).astype(jnp.float32)
        lo = v - hi
        return (jnp.dot(hi, m, preferred_element_type=jnp.float32)
                + jnp.dot(lo, m, preferred_element_type=jnp.float32))

    mean = seg_sum(x) * jnp.float32(1.0 / d)            # per-segment, broadcast
    diff = x - mean
    var = seg_sum(diff * diff) * jnp.float32(1.0 / (d - 1))
    inv = pl.reciprocal(jnp.sqrt(var) + jnp.float32(eps), approx=False)
    y = a_ref[...].astype(jnp.float32) * (diff * inv) + b_ref[...].astype(jnp.float32)
    o_ref[...] = y.astype(o_ref.dtype)


# --------------------------------------------------------------------------
# Wrapper
# --------------------------------------------------------------------------
def layernorm_pallas(x2d, a_2, b_2, *, eps=1e-6):
    """x2d: (R, D); a_2, b_2: (D,). Returns (R, D). No wrapper padding/copies."""
    R, D = x2d.shape
    assert D > 1, "unbiased std needs D > 1"
    itemsize = jnp.dtype(x2d.dtype).itemsize
    sublane = _sublane_pack(itemsize)
    vmem_limit, max_block_bytes = _vmem_limits(itemsize)
    params = pltpu.CompilerParams(dimension_semantics=("parallel",),
                                  vmem_limit_bytes=vmem_limit)

    # ---- lane-dense grouped path for small D (128 % D == 0) ----------------
    g = 128 // D if (D < 128 and 128 % D == 0) else 1
    if g > 1 and R % g == 0:
        Rg, P = R // g, g * D
        xg = x2d.reshape(Rg, P)                  # contiguous reshape: no HBM copy
        a_g = jnp.tile(a_2.astype(jnp.float32), g).reshape(1, P)
        b_g = jnp.tile(b_2.astype(jnp.float32), g).reshape(1, P)
        lane_seg = jnp.arange(P, dtype=jnp.int32) // D
        m = (lane_seg[:, None] == lane_seg[None, :]).astype(jnp.float32)   # (P, P)

        tile_rows = _choose_tile_rows(Rg, P * itemsize, sublane, max_block_bytes)
        out = pl.pallas_call(
            functools.partial(_layernorm_grouped_kernel, d=D, eps=eps),
            out_shape=jax.ShapeDtypeStruct((Rg, P), x2d.dtype),
            grid_spec=pltpu.PrefetchScalarGridSpec(
                num_scalar_prefetch=0,
                grid=(pl.cdiv(Rg, tile_rows),),
                in_specs=[
                    pl.BlockSpec((tile_rows, P), lambda i: (i, 0)),   # x rows
                    pl.BlockSpec((1, P), lambda i: (0, 0)),           # a_2
                    pl.BlockSpec((1, P), lambda i: (0, 0)),           # b_2
                    pl.BlockSpec((P, P), lambda i: (0, 0)),           # seg matrix
                ],
                out_specs=pl.BlockSpec((tile_rows, P), lambda i: (i, 0)),
            ),
            compiler_params=params,
        )(xg, a_g, b_g, m)
        return out.reshape(R, D)

    # ---- general path (lane-dense whenever D is a multiple of 128) ---------
    # TODO(synk): for production keep d_model a multiple of 128 (or fuse this
    # LayerNorm into the producing layer) so this path stays lane-dense.
    a_r = a_2.reshape(1, D).astype(jnp.float32)
    b_r = b_2.reshape(1, D).astype(jnp.float32)
    tile_rows = _choose_tile_rows(R, D * itemsize, sublane, max_block_bytes)
    return pl.pallas_call(
        functools.partial(_layernorm_kernel, eps=eps),
        out_shape=jax.ShapeDtypeStruct((R, D), x2d.dtype),
        grid_spec=pltpu.PrefetchScalarGridSpec(
            num_scalar_prefetch=0,
            grid=(pl.cdiv(R, tile_rows),),        # partial last block, no pad
            in_specs=[
                pl.BlockSpec((tile_rows, D), lambda i: (i, 0)),
                pl.BlockSpec((1, D), lambda i: (0, 0)),
                pl.BlockSpec((1, D), lambda i: (0, 0)),
            ],
            out_specs=pl.BlockSpec((tile_rows, D), lambda i: (i, 0)),
        ),
        compiler_params=params,
    )(x2d, a_r, b_r)


# --------------------------------------------------------------------------
# Decoder forward (JAX glue around the Pallas LayerNorm kernel)
# --------------------------------------------------------------------------
def decoder_forward(x, memory, src_mask, tgt_mask, batch_index,
                    *, num_layers, a_2, b_2, eps=1e-6):
    """Mirrors Decoder.forward.

    x: (B, S_tgt, D); memory: (B, S_src, D); src_mask: (B, 1, S_src);
    tgt_mask: (B, S_tgt, S_tgt); batch_index: (B,)
    """
    prior = 0.0
    for _ in range(num_layers):
        # TODO(synk): DecoderLayer.forward (group attention / prior update) is
        # not defined in the provided source; the layer stack is a passthrough.
        # Once implemented, fuse the final LayerNorm into the last layer's
        # output epilogue instead of a standalone HBM round-trip.
        pass
    del memory, src_mask, tgt_mask, batch_index, prior

    B, S, D = x.shape
    y2d = layernorm_pallas(x.reshape(B * S, D), a_2, b_2, eps=eps)
    return y2d.reshape(B, S, D)


# --------------------------------------------------------------------------
# Demo / correctness check
# --------------------------------------------------------------------------
def _ref_layernorm(v, a, b, eps=1e-6):
    mean = jnp.mean(v, axis=-1, keepdims=True)
    diff = v - mean
    std = jnp.sqrt(jnp.sum(diff * diff, axis=-1, keepdims=True) / (v.shape[-1] - 1))
    return a * diff / (std + eps) + b


if __name__ == "__main__":
    B, S_TGT, S_SRC, D = 2, 8, 8, 32
    N_LAYERS = 2

    key = jax.random.PRNGKey(0)
    kx, km = jax.random.split(key)
    x = jax.random.normal(kx, (B, S_TGT, D), dtype=jnp.float32)
    memory = jax.random.normal(km, (B, S_SRC, D), dtype=jnp.float32)
    src_mask = jnp.ones((B, 1, S_SRC), dtype=jnp.bool_)
    tgt_mask = jnp.tril(jnp.ones((S_TGT, S_TGT), dtype=jnp.bool_))[None].repeat(B, 0)
    batch_index = jnp.arange(B, dtype=jnp.int32)

    # LayerNorm params initialized exactly as in the module __init__.
    a_2 = jnp.ones((D,), dtype=jnp.float32)
    b_2 = jnp.zeros((D,), dtype=jnp.float32)

    out = decoder_forward(x, memory, src_mask, tgt_mask, batch_index,
                          num_layers=N_LAYERS, a_2=a_2, b_2=b_2)
    out = jax.block_until_ready(out)
    ref = _ref_layernorm(x, a_2, b_2)
    assert jnp.allclose(out, ref, atol=1e-4, rtol=1e-4), "grouped-path mismatch"

    # Also exercise the general lane-dense path (D multiple of 128) with a
    # grid whose last block is partial (no wrapper padding needed).
    D2, R2 = 128, 52
    x2 = jax.random.normal(jax.random.PRNGKey(1), (R2, D2), dtype=jnp.float32)
    a2 = jnp.linspace(0.5, 1.5, D2, dtype=jnp.float32)
    b2 = jnp.linspace(-0.1, 0.1, D2, dtype=jnp.float32)
    out2 = jax.block_until_ready(layernorm_pallas(x2, a2, b2))
    ref2 = _ref_layernorm(x2, a2, b2)
    assert jnp.allclose(out2, ref2, atol=1e-4, rtol=1e-4), "simple-path mismatch"

    print("KERNEL_OK")
</pallas_src>

<mosaic_0001>
module attributes {stable_mosaic.version = 11 : i64} {
  func.func @_layernorm_grouped_kernel(%arg0: i32, %arg1: memref<4x128xf32, #tpu.memory_space<vmem>>, %arg2: memref<1x128xf32, #tpu.memory_space<vmem>>, %arg3: memref<1x128xf32, #tpu.memory_space<vmem>>, %arg4: memref<128x128xf32, #tpu.memory_space<vmem>>, %arg5: memref<4x128xf32, #tpu.memory_space<vmem>>) attributes {dimension_semantics = [#tpu.dimension_semantics<parallel>], iteration_bounds = array<i64: 1>, scalar_prefetch = 0 : i64, scratch_operands = 0 : i64, tpu.core_type = #tpu.core_type<tc>, window_params = [{transform_indices = @transform_0, window_bounds = array<i64: 4, 128>}, {pipeline_mode = #tpu.pipeline_mode<synchronous>, transform_indices = @transform_1, window_bounds = array<i64: 1, 128>}, {pipeline_mode = #tpu.pipeline_mode<synchronous>, transform_indices = @transform_2, window_bounds = array<i64: 1, 128>}, {pipeline_mode = #tpu.pipeline_mode<synchronous>, transform_indices = @transform_3, window_bounds = array<i64: 128, 128>}, {transform_indices = @transform_4, window_bounds = array<i64: 4, 128>}]} {
    %c0 = arith.constant 0 : index
    %c0_0 = arith.constant 0 : index
    %0 = vector.load %arg1[%c0, %c0_0] : memref<4x128xf32, #tpu.memory_space<vmem>>, vector<4x128xf32>
    %c0_1 = arith.constant 0 : index
    %c0_2 = arith.constant 0 : index
    %1 = vector.load %arg4[%c0_1, %c0_2] : memref<128x128xf32, #tpu.memory_space<vmem>>, vector<128x128xf32>
    %2 = arith.truncf %0 : vector<4x128xf32> to vector<4x128xbf16>
    %3 = arith.extf %2 : vector<4x128xbf16> to vector<4x128xf32>
    %4 = arith.subf %0, %3 : vector<4x128xf32>
    %cst = arith.constant dense<0.000000e+00> : vector<4x128xf32>
    %5 = tpu.matmul %3, %1, %cst {dimension_numbers = #tpu.dot_dimension_numbers<[1], [0], [0], [1], [0, 0, 1, 1], [], []>} : vector<4x128xf32>, vector<128x128xf32>, vector<4x128xf32> -> vector<4x128xf32>
    %cst_3 = arith.constant dense<0.000000e+00> : vector<4x128xf32>
    %6 = tpu.matmul %4, %1, %cst_3 {dimension_numbers = #tpu.dot_dimension_numbers<[1], [0], [0], [1], [0, 0, 1, 1], [], []>} : vector<4x128xf32>, vector<128x128xf32>, vector<4x128xf32> -> vector<4x128xf32>
    %7 = arith.addf %5, %6 : vector<4x128xf32>
    %cst_4 = arith.constant 3.125000e-02 : f32
    %8 = vector.broadcast %cst_4 : f32 to vector<4x128xf32>
    %9 = arith.mulf %7, %8 : vector<4x128xf32>
    %10 = arith.subf %0, %9 : vector<4x128xf32>
    %11 = arith.mulf %10, %10 : vector<4x128xf32>
    %12 = arith.truncf %11 : vector<4x128xf32> to vector<4x128xbf16>
    %13 = arith.extf %12 : vector<4x128xbf16> to vector<4x128xf32>
    %14 = arith.subf %11, %13 : vector<4x128xf32>
    %cst_5 = arith.constant dense<0.000000e+00> : vector<4x128xf32>
    %15 = tpu.matmul %13, %1, %cst_5 {dimension_numbers = #tpu.dot_dimension_numbers<[1], [0], [0], [1], [0, 0, 1, 1], [], []>} : vector<4x128xf32>, vector<128x128xf32>, vector<4x128xf32> -> vector<4x128xf32>
    %cst_6 = arith.constant dense<0.000000e+00> : vector<4x128xf32>
    %16 = tpu.matmul %14, %1, %cst_6 {dimension_numbers = #tpu.dot_dimension_numbers<[1], [0], [0], [1], [0, 0, 1, 1], [], []>} : vector<4x128xf32>, vector<128x128xf32>, vector<4x128xf32> -> vector<4x128xf32>
    %17 = arith.addf %15, %16 : vector<4x128xf32>
    %cst_7 = arith.constant 0.0322580636 : f32
    %18 = vector.broadcast %cst_7 : f32 to vector<4x128xf32>
    %19 = arith.mulf %17, %18 : vector<4x128xf32>
    %20 = math.sqrt %19 : vector<4x128xf32>
    %cst_8 = arith.constant 9.99999997E-7 : f32
    %21 = vector.broadcast %cst_8 : f32 to vector<4x128xf32>
    %22 = arith.addf %20, %21 : vector<4x128xf32>
    %23 = tpu.reciprocal %22 : vector<4x128xf32> -> vector<4x128xf32>
    %c0_9 = arith.constant 0 : index
    %c0_10 = arith.constant 0 : index
    %24 = vector.load %arg2[%c0_9, %c0_10] : memref<1x128xf32, #tpu.memory_space<vmem>>, vector<1x128xf32>
    %25 = arith.mulf %10, %23 : vector<4x128xf32>
    %26 = vector.broadcast %24 : vector<1x128xf32> to vector<4x128xf32>
    %27 = arith.mulf %26, %25 : vector<4x128xf32>
    %c0_11 = arith.constant 0 : index
    %c0_12 = arith.constant 0 : index
    %28 = vector.load %arg3[%c0_11, %c0_12] : memref<1x128xf32, #tpu.memory_space<vmem>>, vector<1x128xf32>
    %29 = vector.broadcast %28 : vector<1x128xf32> to vector<4x128xf32>
    %30 = arith.addf %27, %29 : vector<4x128xf32>
    %c0_13 = arith.constant 0 : index
    %c0_14 = arith.constant 0 : index
    %31 = vector.load %arg5[%c0_13, %c0_14] : memref<4x128xf32, #tpu.memory_space<vmem>>, vector<4x128xf32>
    tpu.vector_store %arg5[%c0_13, %c0_14], %30 {strides = array<i32>} : memref<4x128xf32, #tpu.memory_space<vmem>>, vector<4x128xf32>,
    return
  }
  func.func @transform_0(%arg0: i32) -> (i32, i32) {
    %c0_i32 = arith.constant 0 : i32
    %c0_i32_0 = arith.constant 0 : i32
    return %arg0, %c0_i32 : i32, i32
  }
  func.func @transform_1(%arg0: i32) -> (i32, i32) {
    %c0_i32 = arith.constant 0 : i32
    %c0_i32_0 = arith.constant 0 : i32
    %c0_i32_1 = arith.constant 0 : i32
    return %c0_i32, %c0_i32_0 : i32, i32
  }
  func.func @transform_2(%arg0: i32) -> (i32, i32) {
    %c0_i32 = arith.constant 0 : i32
    %c0_i32_0 = arith.constant 0 : i32
    %c0_i32_1 = arith.constant 0 : i32
    return %c0_i32, %c0_i32_0 : i32, i32
  }
  func.func @transform_3(%arg0: i32) -> (i32, i32) {
    %c0_i32 = arith.constant 0 : i32
    %c0_i32_0 = arith.constant 0 : i32
    %c0_i32_1 = arith.constant 0 : i32
    return %c0_i32, %c0_i32_0 : i32, i32
  }
  func.func @transform_4(%arg0: i32) -> (i32, i32) {
    %c0_i32 = arith.constant 0 : i32
    %c0_i32_0 = arith.constant 0 : i32
    return %arg0, %c0_i32 : i32, i32
  }
}

</mosaic_0001>

<llo_original>
// kernel: tpu_custom_call.1
$region0: #{tpu_custom_call.1}
  #allocation0 [shape = 'u32[]', space=smem, size = 0x4, offset = 0x4, fixed_abs, tag = 'smem constant byte address 0x4 - core index']
  #allocation1 [shape = 'u32[144,128]{1,0:T(1,128)}', space=vmem, size = 0x12000, scoped, tag = 'internal scratch']
  %s0 = inlined_call_operand.hbm [shape: f32[4,128], index: 0, kind: input, shape index: {}]
  %s1 = inlined_call_operand.vmem [shape: f32[1,128], index: 1, kind: input, shape index: {}]
  %s2 = inlined_call_operand.vmem [shape: f32[1,128], index: 2, kind: input, shape index: {}]
  %s3 = inlined_call_operand.hbm [shape: f32[128,128], index: 3, kind: input, shape index: {}]
  %s4 = inlined_call_operand.hbm [shape: f32[4,128], index: 4, kind: output, shape index: {}]
  %s5 = sld [smem:[#allocation0]]
  $region34: #{tpu_custom_call.1} parent=0
    _
  %s7 = ssub.s32 1, %s5
  %s8 = scalar_select 0, %s7, %s5
  $region1: #{tpu_custom_call.1} parent=0
    #allocation2 [shape = 'u8[2048]{0}', space=vmem, size = 0x800, scoped, tag = 'input window, operand 0, single buffered']
    #allocation3 [shape = 's32[1]{0}', space=sflag, size = 0x4, scoped, tag = 'scoped memory for tpu_custom_call.1']
    #allocation4 [shape = 's32[1]{0}', space=sflag, size = 0x4, scoped, tag = 'scoped memory for tpu_custom_call.1']
    #allocation5 [shape = 'u8[65536]{0}', space=vmem, size = 0x10000, scoped, tag = 'input window, operand 3, single buffered']
    #allocation6 [shape = 's32[1]{0}', space=sflag, size = 0x4, scoped, tag = 'scoped memory for tpu_custom_call.1']
    #allocation7 [shape = 'u8[2048]{0}', space=vmem, size = 0x800, scoped, tag = 'output window, operand 0, single buffered']
    %9 = vsyncpa [#allocation3], 0
    %10 = vsyncpa [#allocation6], 0
    %11 = vsyncpa [#allocation4], 0
    // Predicated region
    $region2: #{tpu_custom_call.1} parent=1 // pred_check
      _
    $region3: #{tpu_custom_call.1} parent=1 // pred_check_branch
      %13 = sbr.rel (0) target = $region5
    $region4: #{tpu_custom_call.1} parent=1 // pred_region
      %s15 = ssub.s32 64, 64
      %16 = vsyncadd [#allocation3], %s15
      %s18 = sshll.u32 [#allocation2], 4
      %s19 = int_to_ptr.vmem [resolvable:$true] %s18
      %21 = dma.hbm_to_vmem [thread:$0]  %s0, 64, %s19, [#allocation3]
    $region5: #{tpu_custom_call.1} parent=1 // pred_fallthru
      _
    // Predicated region
    $region6: #{tpu_custom_call.1} parent=1 // pred_check
      _
    $region7: #{tpu_custom_call.1} parent=1 // pred_check_branch
      %23 = sbr.rel (0) target = $region9
    $region8: #{tpu_custom_call.1} parent=1 // pred_region
      _
    $region9: #{tpu_custom_call.1} parent=1 // pred_fallthru
      _
    // Predicated region
    $region10: #{tpu_custom_call.1} parent=1 // pred_check
      _
    $region11: #{tpu_custom_call.1} parent=1 // pred_check_branch
      %25 = sbr.rel (0) target = $region13
    $region12: #{tpu_custom_call.1} parent=1 // pred_region
      _
    $region13: #{tpu_custom_call.1} parent=1 // pred_fallthru
      _
    // Predicated region
    $region14: #{tpu_custom_call.1} parent=1 // pred_check
      _
    $region15: #{tpu_custom_call.1} parent=1 // pred_check_branch
      %27 = sbr.rel (0) target = $region17
    $region16: #{tpu_custom_call.1} parent=1 // pred_region
      %s29 = ssub.s32 2048, 2048
      %30 = vsyncadd [#allocation6], %s29
      %s31 = sshll.u32 [#allocation5], 4
      %s32 = int_to_ptr.vmem [resolvable:$true] %s31
      %37 = dma.hbm_to_vmem [thread:$0]  %s3, 2048, %s32, [#allocation6], 128, 128, 8
    $region17: #{tpu_custom_call.1} parent=1 // pred_fallthru
      _
    // Predicated region
    $region18: #{tpu_custom_call.1} parent=1 // pred_check
      _
    $region19: #{tpu_custom_call.1} parent=1 // pred_check_branch
      %39 = sbr.rel (0) target = $region21
    $region20: #{tpu_custom_call.1} parent=1 // pred_region
      %40 = dma.done [#allocation3], 64
    $region21: #{tpu_custom_call.1} parent=1 // pred_fallthru
      _
    // Predicated region
    $region22: #{tpu_custom_call.1} parent=1 // pred_check
      _
    $region23: #{tpu_custom_call.1} parent=1 // pred_check_branch
      %42 = sbr.rel (0) target = $region25
    $region24: #{tpu_custom_call.1} parent=1 // pred_region
      %43 = dma.done [#allocation6], 2048
    $region25: #{tpu_custom_call.1} parent=1 // pred_fallthru
      _
    %v44 = vld [vmem:[#allocation2] sm:$0xf]
    %v45 = vld [vmem:[#allocation5] sm:$0xff]
    %v46 = vld [vmem:[#allocation5 + $0x8] sm:$0xff]
    %v47 = vld [vmem:[#allocation5 + $0x10] sm:$0xff]
    %v48 = vld [vmem:[#allocation5 + $0x18] sm:$0xff]
    %v49 = vld [vmem:[#allocation5 + $0x20] sm:$0xff]
    %v50 = vld [vmem:[#allocation5 + $0x28] sm:$0xff]
    %v51 = vld [vmem:[#allocation5 + $0x30] sm:$0xff]
    %v52 = vld [vmem:[#allocation5 + $0x38] sm:$0xff]
    %v53 = vld [vmem:[#allocation5 + $0x40] sm:$0xff]
    %v54 = vld [vmem:[#allocation5 + $0x48] sm:$0xff]
    %v55 = vld [vmem:[#allocation5 + $0x50] sm:$0xff]
    %v56 = vld [vmem:[#allocation5 + $0x58] sm:$0xff]
    %v57 = vld [vmem:[#allocation5 + $0x60] sm:$0xff]
    %v58 = vld [vmem:[#allocation5 + $0x68] sm:$0xff]
    %v59 = vld [vmem:[#allocation5 + $0x70] sm:$0xff]
    %v60 = vld [vmem:[#allocation5 + $0x78] sm:$0xff]
    %v61 = vpack.c.bf16 %v44, %v44
    %v62 = vunpack.c.l.bf16 %v61
    %v63 = vsub.f32 %v44, %v62
    %64 = vmatprep.subr.mxu0 0.0
    %65 = vmatpush1.msra.mxu0 %v45
    %66 = vmatprep.subr.mxu0 0.0
    %67 = vmatpush1.msra.mxu0 %v46
    %68 = vmatprep.subr.mxu0 0.0
    %69 = vmatpush1.msra.mxu0 %v47
    %70 = vmatprep.subr.mxu0 0.0
    %71 = vmatpush1.msra.mxu0 %v48
    %72 = vmatprep.subr.mxu0 0.0
    %73 = vmatpush1.msra.mxu0 %v49
    %74 = vmatprep.subr.mxu0 0.0
    %75 = vmatpush1.msra.mxu0 %v50
    %76 = vmatprep.subr.mxu0 0.0
    %77 = vmatpush1.msra.mxu0 %v51
    %78 = vmatprep.subr.mxu0 0.0
    %79 = vmatpush1.msra.mxu0 %v52
    %80 = vmatprep.subr.mxu0 0.0
    %81 = vmatpush1.msra.mxu0 %v53
    %82 = vmatprep.subr.mxu0 0.0
    %83 = vmatpush1.msra.mxu0 %v54
    %84 = vmatprep.subr.mxu0 0.0
    %85 = vmatpush1.msra.mxu0 %v55
    %86 = vmatprep.subr.mxu0 0.0
    %87 = vmatpush1.msra.mxu0 %v56
    %88 = vmatprep.subr.mxu0 0.0
    %89 = vmatpush1.msra.mxu0 %v57
    %90 = vmatprep.subr.mxu0 0.0
    %91 = vmatpush1.msra.mxu0 %v58
    %92 = vmatprep.subr.mxu0 0.0
    %93 = vmatpush1.msra.mxu0 %v59
    %94 = vmatprep.subr.mxu0 0.0
    %95 = vmatpush1.msra.mxu0 %v60
    %96 = vmatprep.subr.mxu0 0.0
    %97 = vmatpush1.msra.mxu0 0.0
    %98 = vmatprep.subr.mxu0 0.0
    %99 = vmatpush1.msra.mxu0 0.0
    %100 = vmatprep.subr.mxu0 0.0
    %101 = vmatpush1.msra.mxu0 0.0
    %102 = vmatprep.subr.mxu0 0.0
    %103 = vmatpush1.msra.mxu0 0.0
    %104 = vmatprep.subr.mxu0 0.0
    %105 = vmatpush1.msra.mxu0 0.0
    %106 = vmatprep.subr.mxu0 0.0
    %107 = vmatpush1.msra.mxu0 0.0
    %108 = vmatprep.subr.mxu0 0.0
    %109 = vmatpush1.msra.mxu0 0.0
    %110 = vmatprep.subr.mxu0 0.0
    %111 = vmatpush1.msra.mxu0 0.0
    %112 = vmatprep.subr.mxu0 0.0
    %113 = vmatpush1.msra.mxu0 0.0
    %114 = vmatprep.subr.mxu0 0.0
    %115 = vmatpush1.msra.mxu0 0.0
    %116 = vmatprep.subr.mxu0 0.0
    %117 = vmatpush1.msra.mxu0 0.0
    %118 = vmatprep.subr.mxu0 0.0
    %119 = vmatpush1.msra.mxu0 0.0
    %120 = vmatprep.subr.mxu0 0.0
    %121 = vmatpush1.msra.mxu0 0.0
    %122 = vmatprep.subr.mxu0 0.0
    %123 = vmatpush1.msra.mxu0 0.0
    %124 = vmatprep.subr.mxu0 0.0
    %125 = vmatpush1.msra.mxu0 0.0
    %126 = vmatprep.subr.mxu0 0.0
    %127 = vmatpush1.msra.mxu0 0.0
    %128 = vmatprep.mubr.f32.mxu0 0.0
    %129 = vmatmul.mubr.f32.gmra.mrb[0].mxu0 %v63
    %v130 = vpop.f32.mrb[0].mxu0
    %v131 = vadd.f32 0.0, %v130
    %v132 = vpop.f32.mrb[0].mxu0
    %133 = vdwg.mxu0
    %134 = vmatprep.subr.mxu0 0.0
    %135 = vmatpush1.msra.mxu0 %v45
    %136 = vmatprep.subr.mxu0 0.0
    %137 = vmatpush1.msra.mxu0 %v46
    %138 = vmatprep.subr.mxu0 0.0
    %139 = vmatpush1.msra.mxu0 %v47
    %140 = vmatprep.subr.mxu0 0.0
    %141 = vmatpush1.msra.mxu0 %v48
    %142 = vmatprep.subr.mxu0 0.0
    %143 = vmatpush1.msra.mxu0 %v49
    %144 = vmatprep.subr.mxu0 0.0
    %145 = vmatpush1.msra.mxu0 %v50
    %146 = vmatprep.subr.mxu0 0.0
    %147 = vmatpush1.msra.mxu0 %v51
    %148 = vmatprep.subr.mxu0 0.0
    %149 = vmatpush1.msra.mxu0 %v52
    %150 = vmatprep.subr.mxu0 0.0
    %151 = vmatpush1.msra.mxu0 %v53
    %152 = vmatprep.subr.mxu0 0.0
    %153 = vmatpush1.msra.mxu0 %v54
    %154 = vmatprep.subr.mxu0 0.0
    %155 = vmatpush1.msra.mxu0 %v55
    %156 = vmatprep.subr.mxu0 0.0
    %157 = vmatpush1.msra.mxu0 %v56
    %158 = vmatprep.subr.mxu0 0.0
    %159 = vmatpush1.msra.mxu0 %v57
    %160 = vmatprep.subr.mxu0 0.0
    %161 = vmatpush1.msra.mxu0 %v58
    %162 = vmatprep.subr.mxu0 0.0
    %163 = vmatpush1.msra.mxu0 %v59
    %164 = vmatprep.subr.mxu0 0.0
    %165 = vmatpush1.msra.mxu0 %v60
    %166 = vmatprep.subr.mxu0 0.0
    %167 = vmatpush1.msra.mxu0 0.0
    %168 = vmatprep.subr.mxu0 0.0
    %169 = vmatpush1.msra.mxu0 0.0
    %170 = vmatprep.subr.mxu0 0.0
    %171 = vmatpush1.msra.mxu0 0.0
    %172 = vmatprep.subr.mxu0 0.0
    %173 = vmatpush1.msra.mxu0 0.0
    %174 = vmatprep.subr.mxu0 0.0
    %175 = vmatpush1.msra.mxu0 0.0
    %176 = vmatprep.subr.mxu0 0.0
    %177 = vmatpush1.msra.mxu0 0.0
    %178 = vmatprep.subr.mxu0 0.0
    %179 = vmatpush1.msra.mxu0 0.0
    %180 = vmatprep.subr.mxu0 0.0
    %181 = vmatpush1.msra.mxu0 0.0
    %182 = vmatprep.subr.mxu0 0.0
    %183 = vmatpush1.msra.mxu0 0.0
    %184 = vmatprep.subr.mxu0 0.0
    %185 = vmatpush1.msra.mxu0 0.0
    %186 = vmatprep.subr.mxu0 0.0
    %187 = vmatpush1.msra.mxu0 0.0
    %188 = vmatprep.subr.mxu0 0.0
    %189 = vmatpush1.msra.mxu0 0.0
    %190 = vmatprep.subr.mxu0 0.0
    %191 = vmatpush1.msra.mxu0 0.0
    %192 = vmatprep.subr.mxu0 0.0
    %193 = vmatpush1.msra.mxu0 0.0
    %194 = vmatprep.subr.mxu0 0.0
    %195 = vmatpush1.msra.mxu0 0.0
    %196 = vmatprep.subr.mxu0 0.0
    %197 = vmatpush1.msra.mxu0 0.0
    %198 = vmatprep.mubr.f32.mxu0 0.0
    %199 = vmatmul.mubr.f32.gmra.mrb[0].mxu0 %v62
    %v200 = vpop.f32.mrb[0].mxu0
    %v201 = vadd.f32 %v131, %v200
    %v202 = vpop.f32.mrb[0].mxu0
    %203 = vdwg.mxu0
    %v204 = vmul.f32 %v201, 0.03125
    %v205 = vsub.f32 %v44, %v204
    %v206 = vmul.f32 %v205, %v205
    %v207 = vpack.c.bf16 %v206, %v206
    %v208 = vunpack.c.l.bf16 %v207
    %v209 = vsub.f32 %v206, %v208
    %210 = vmatprep.subr.mxu0 0.0
    %211 = vmatpush1.msra.mxu0 %v45
    %212 = vmatprep.subr.mxu0 0.0
    %213 = vmatpush1.msra.mxu0 %v46
    %214 = vmatprep.subr.mxu0 0.0
    %215 = vmatpush1.msra.mxu0 %v47
    %216 = vmatprep.subr.mxu0 0.0
    %217 = vmatpush1.msra.mxu0 %v48
    %218 = vmatprep.subr.mxu0 0.0
    %219 = vmatpush1.msra.mxu0 %v49
    %220 = vmatprep.subr.mxu0 0.0
    %221 = vmatpush1.msra.mxu0 %v50
    %222 = vmatprep.subr.mxu0 0.0
    %223 = vmatpush1.msra.mxu0 %v51
    %224 = vmatprep.subr.mxu0 0.0
    %225 = vmatpush1.msra.mxu0 %v52
    %226 = vmatprep.subr.mxu0 0.0
    %227 = vmatpush1.msra.mxu0 %v53
    %228 = vmatprep.subr.mxu0 0.0
    %229 = vmatpush1.msra.mxu0 %v54
    %230 = vmatprep.subr.mxu0 0.0
    %231 = vmatpush1.msra.mxu0 %v55
    %232 = vmatprep.subr.mxu0 0.0
    %233 = vmatpush1.msra.mxu0 %v56
    %234 = vmatprep.subr.mxu0 0.0
    %235 = vmatpush1.msra.mxu0 %v57
    %236 = vmatprep.subr.mxu0 0.0
    %237 = vmatpush1.msra.mxu0 %v58
    %238 = vmatprep.subr.mxu0 0.0
    %239 = vmatpush1.msra.mxu0 %v59
    %240 = vmatprep.subr.mxu0 0.0
    %241 = vmatpush1.msra.mxu0 %v60
    %242 = vmatprep.subr.mxu0 0.0
    %243 = vmatpush1.msra.mxu0 0.0
    %244 = vmatprep.subr.mxu0 0.0
    %245 = vmatpush1.msra.mxu0 0.0
    %246 = vmatprep.subr.mxu0 0.0
    %247 = vmatpush1.msra.mxu0 0.0
    %248 = vmatprep.subr.mxu0 0.0
    %249 = vmatpush1.msra.mxu0 0.0
    %250 = vmatprep.subr.mxu0 0.0
    %251 = vmatpush1.msra.mxu0 0.0
    %252 = vmatprep.subr.mxu0 0.0
    %253 = vmatpush1.msra.mxu0 0.0
    %254 = vmatprep.subr.mxu0 0.0
    %255 = vmatpush1.msra.mxu0 0.0
    %256 = vmatprep.subr.mxu0 0.0
    %257 = vmatpush1.msra.mxu0 0.0
    %258 = vmatprep.subr.mxu0 0.0
    %259 = vmatpush1.msra.mxu0 0.0
    %260 = vmatprep.subr.mxu0 0.0
    %261 = vmatpush1.msra.mxu0 0.0
    %262 = vmatprep.subr.mxu0 0.0
    %263 = vmatpush1.msra.mxu0 0.0
    %264 = vmatprep.subr.mxu0 0.0
    %265 = vmatpush1.msra.mxu0 0.0
    %266 = vmatprep.subr.mxu0 0.0
    %267 = vmatpush1.msra.mxu0 0.0
    %268 = vmatprep.subr.mxu0 0.0
    %269 = vmatpush1.msra.mxu0 0.0
    %270 = vmatprep.subr.mxu0 0.0
    %271 = vmatpush1.msra.mxu0 0.0
    %272 = vmatprep.subr.mxu0 0.0
    %273 = vmatpush1.msra.mxu0 0.0
    %274 = vmatprep.mubr.f32.mxu0 0.0
    %275 = vmatmul.mubr.f32.gmra.mrb[0].mxu0 %v209
    %v276 = vpop.f32.mrb[0].mxu0
    %v277 = vadd.f32 0.0, %v276
    %v278 = vpop.f32.mrb[0].mxu0
    %279 = vdwg.mxu0
    %280 = vmatprep.subr.mxu0 0.0
    %281 = vmatpush1.msra.mxu0 %v45
    %282 = vmatprep.subr.mxu0 0.0
    %283 = vmatpush1.msra.mxu0 %v46
    %284 = vmatprep.subr.mxu0 0.0
    %285 = vmatpush1.msra.mxu0 %v47
    %286 = vmatprep.subr.mxu0 0.0
    %287 = vmatpush1.msra.mxu0 %v48
    %288 = vmatprep.subr.mxu0 0.0
    %289 = vmatpush1.msra.mxu0 %v49
    %290 = vmatprep.subr.mxu0 0.0
    %291 = vmatpush1.msra.mxu0 %v50
    %292 = vmatprep.subr.mxu0 0.0
    %293 = vmatpush1.msra.mxu0 %v51
    %294 = vmatprep.subr.mxu0 0.0
    %295 = vmatpush1.msra.mxu0 %v52
    %296 = vmatprep.subr.mxu0 0.0
    %297 = vmatpush1.msra.mxu0 %v53
    %298 = vmatprep.subr.mxu0 0.0
    %299 = vmatpush1.msra.mxu0 %v54
    %300 = vmatprep.subr.mxu0 0.0
    %301 = vmatpush1.msra.mxu0 %v55
    %302 = vmatprep.subr.mxu0 0.0
    %303 = vmatpush1.msra.mxu0 %v56
    %304 = vmatprep.subr.mxu0 0.0
    %305 = vmatpush1.msra.mxu0 %v57
    %306 = vmatprep.subr.mxu0 0.0
    %307 = vmatpush1.msra.mxu0 %v58
    %308 = vmatprep.subr.mxu0 0.0
    %309 = vmatpush1.msra.mxu0 %v59
    %310 = vmatprep.subr.mxu0 0.0
    %311 = vmatpush1.msra.mxu0 %v60
    %312 = vmatprep.subr.mxu0 0.0
    %313 = vmatpush1.msra.mxu0 0.0
    %314 = vmatprep.subr.mxu0 0.0
    %315 = vmatpush1.msra.mxu0 0.0
    %316 = vmatprep.subr.mxu0 0.0
    %317 = vmatpush1.msra.mxu0 0.0
    %318 = vmatprep.subr.mxu0 0.0
    %319 = vmatpush1.msra.mxu0 0.0
    %320 = vmatprep.subr.mxu0 0.0
    %321 = vmatpush1.msra.mxu0 0.0
    %322 = vmatprep.subr.mxu0 0.0
    %323 = vmatpush1.msra.mxu0 0.0
    %324 = vmatprep.subr.mxu0 0.0
    %325 = vmatpush1.msra.mxu0 0.0
    %326 = vmatprep.subr.mxu0 0.0
    %327 = vmatpush1.msra.mxu0 0.0
    %328 = vmatprep.subr.mxu0 0.0
    %329 = vmatpush1.msra.mxu0 0.0
    %330 = vmatprep.subr.mxu0 0.0
    %331 = vmatpush1.msra.mxu0 0.0
    %332 = vmatprep.subr.mxu0 0.0
    %333 = vmatpush1.msra.mxu0 0.0
    %334 = vmatprep.subr.mxu0 0.0
    %335 = vmatpush1.msra.mxu0 0.0
    %336 = vmatprep.subr.mxu0 0.0
    %337 = vmatpush1.msra.mxu0 0.0
    %338 = vmatprep.subr.mxu0 0.0
    %339 = vmatpush1.msra.mxu0 0.0
    %340 = vmatprep.subr.mxu0 0.0
    %341 = vmatpush1.msra.mxu0 0.0
    %342 = vmatprep.subr.mxu0 0.0
    %343 = vmatpush1.msra.mxu0 0.0
    %344 = vmatprep.mubr.f32.mxu0 0.0
    %345 = vmatmul.mubr.f32.gmra.mrb[0].mxu0 %v208
    %v346 = vpop.f32.mrb[0].mxu0
    %v347 = vadd.f32 %v277, %v346
    %v348 = vpop.f32.mrb[0].mxu0
    %349 = vdwg.mxu0
    %v350 = vmul.f32 %v347, 0.032258064
    %v351 = vrsqrt.pop %v350
    %v352 = vmul.f32 %v350, %v351
    %vm353 = vcmp.eq.f32.partialorder %v350, inf
    %v354 = vsel %vm353, %v350, %v352
    %vm355 = vcmp.eq.f32.partialorder %v350, 0.0
    %v356 = vand.u32 %v350, 2147483648
    %v357 = vsel %vm355, %v356, %v354
    %v358 = vadd.f32 %v357, 1e-06
    %v359 = vrcp.pop %v358
    %v360 = vld [vmem:[%s1] sm:$0x1]
    %v361 = vmul.f32 %v205, %v359
    %v363 = vlaneseq
    %v364 = vshrl.u32 %v363, 7
    %v365 = vsub.s32 0, %v364
    %v366 = vrot.slane %v360, %v365
    %v368 = vmul.f32 %v366, %v361
    %v369 = vld [vmem:[%s2] sm:$0x1]
    %v371 = vlaneseq
    %v372 = vshrl.u32 %v371, 7
    %v373 = vsub.s32 0, %v372
    %v374 = vrot.slane %v369, %v373
    %v376 = vadd.f32 %v368, %v374
    %377 = vst [vmem:[#allocation7] sm:$0xf] %v376
    // Predicated region
    $region26: #{tpu_custom_call.1} parent=1 // pred_check
      _
    $region27: #{tpu_custom_call.1} parent=1 // pred_check_branch
      %379 = sbr.rel (0) target = $region29
    $region28: #{tpu_custom_call.1} parent=1 // pred_region
      %s381 = ssub.s32 64, 64
      %382 = vsyncadd [#allocation4], %s381
      %s384 = sshll.u32 [#allocation7], 4
      %s385 = int_to_ptr.vmem [resolvable:$true] %s384
      %387 = dma.vmem_to_hbm [thread:$0]  %s385, 64, %s4, [#allocation4]
    $region29: #{tpu_custom_call.1} parent=1 // pred_fallthru
      _
    // Predicated region
    $region30: #{tpu_custom_call.1} parent=1 // pred_check
      _
    $region31: #{tpu_custom_call.1} parent=1 // pred_check_branch
      %389 = sbr.rel (0) target = $region33
    $region32: #{tpu_custom_call.1} parent=1 // pred_region
      %390 = dma.done [#allocation4], 64
    $region33: #{tpu_custom_call.1} parent=1 // pred_fallthru
      _
    %391 = vsyncpa [#allocation3], 1
    %392 = vsyncpa [#allocation6], 1
    %393 = vsyncpa [#allocation4], 1

</llo_original>
